<compile_context>
chip_gen: v7x
topology: tpu7x:2x2x1
jax: 0.10.0
libtpu: 0.0.40
codegen_flags: <defaults>
</compile_context>

<pallas_src>
import jax
import jax.numpy as jnp
from jax import lax
from jax.experimental import pallas as pl
from jax.experimental.pallas import tpu as pltpu


def _cdiv(a, b):
    return -(-a // b)


def _round_up(x, m):
    return _cdiv(x, m) * m


def _tpu_info_attr(names, default):
    try:
        info = pltpu.get_tpu_info()
    except Exception:
        return default
    for name in names:
        v = getattr(info, name, None)
        if isinstance(v, int) and v > 0:
            return v
    return default


def _num_tensorcores():
    n = _tpu_info_attr(
        ("num_tensorcores", "tensorcores_per_chip", "num_cores_per_chip",
         "cores_per_chip", "num_cores"),
        0,
    )
    if 0 < n <= 8:
        return n
    try:
        if "v7" in jax.devices()[0].device_kind.lower():
            return 2
    except Exception:
        pass
    return 1


def _vmem_capacity_bytes():
    return _tpu_info_attr(
        ("vmem_capacity_bytes", "vmem_size_bytes", "vmem_bytes"),
        64 * 1024 * 1024,
    )


def _ce_kernel(lab_ref, yp_ref, w_ref, out_ref, acc_ref):
    """One (TN, C) logits tile of weighted cross-entropy.

    lab_ref : (TN, 1) int32 labels (-1 marks padded rows -> zero contribution)
    yp_ref  : (TN, C) logits
    w_ref   : (1,  C) f32 class weights (resident; only read in finalize)
    out_ref : (1, 2, 128) f32; row 0 = weighted-loss partial, row 1 = weight partial
    acc_ref : (16, C) f32 persistent scratch; rows 0:8 = unweighted loss sums,
              rows 8:16 = per-class hit counts.
    """
    j = pl.program_id(1)

    @pl.when(j == 0)
    def _init():
        acc_ref[...] = jnp.zeros_like(acc_ref)

    yp = yp_ref[...].astype(jnp.float32)      # (TN, C)
    lab = lab_ref[...]                        # (TN, 1) int32

    col = lax.broadcasted_iota(jnp.int32, yp.shape, 1)   # (TN, C)
    sel = col == lab                                     # padded rows -> all False

    # numerically stable logsumexp per row (lane reductions on the XLU)
    m = jnp.max(yp, axis=1, keepdims=True)                               # (TN, 1)
    lse = jnp.log(jnp.sum(jnp.exp(yp - m), axis=1, keepdims=True)) + m   # (TN, 1)

    # Deferred class-weight multiply: accumulate UNWEIGHTED per-class sums.
    contrib = jnp.where(sel, lse - yp, jnp.float32(0.0))  # (TN, C)
    cnt = sel.astype(jnp.float32)                         # (TN, C)

    tn, c = contrib.shape
    # fold the TN/8 sublane groups into the 8-row accumulators: pure vreg adds
    acc_ref[0:8, :] += jnp.sum(contrib.reshape(tn // 8, 8, c), axis=0)
    acc_ref[8:16, :] += jnp.sum(cnt.reshape(tn // 8, 8, c), axis=0)

    @pl.when(j == pl.num_programs(1) - 1)
    def _finalize():
        w = w_ref[...]                                   # (1, C) f32
        loss_sum = jnp.sum(w * acc_ref[0:8, :])          # weighted loss, this slice
        w_sum = jnp.sum(w * acc_ref[8:16, :])            # weight sum,   this slice
        row = lax.broadcasted_iota(jnp.int32, out_ref.shape, 1)
        out_ref[...] = jnp.where(row == 0, loss_sum, w_sum)


def cross_entropy_loss(y_true, y_pred, class_weights, *, labels=None, tile_n=512):
    """Weighted cross-entropy (mean reduction), matching the PyTorch module.

    y_true        : (N, C) one-hot-ish targets (row-argmax is the label)
    y_pred        : (N, C) logits
    class_weights : (C,)   per-class weights
    labels        : optional (N,) integer targets (skips the one-hot argmax pass)
    returns       : ()     f32 scalar loss
    """
    N, C = y_pred.shape
    assert class_weights.shape == (C,)

    # Part of the module forward: targets = y_true.argmax(dim=1).
    if labels is None:
        assert y_true.shape == (N, C)
        labels = jnp.argmax(y_true, axis=1)
    labels = labels.astype(jnp.int32).reshape(N, 1)
    w2d = class_weights.astype(jnp.float32).reshape(1, C)

    # --- generation-aware VMEM budget & tile sizing -------------------------
    vmem_phys = _vmem_capacity_bytes()                       # 128 MiB v5e/v6e, 64 MiB v7x
    vmem_limit = int(min(64 * 1024 * 1024, (vmem_phys * 3) // 4))
    budget = (vmem_limit * 3) // 4                           # headroom: scratch/weights/output
    itemsize = jnp.dtype(y_pred.dtype).itemsize
    # double-buffered logits + ~5 live (TN, C) f32 temps + double-buffered labels
    per_row = C * (2 * itemsize + 5 * 4) + 2 * 4
    tn = min(int(tile_n), max(8, budget // per_row))
    tn = max(8, (tn // 8) * 8)
    tn = min(tn, _round_up(N, 8))

    # --- slice count: only split across TensorCores that actually exist -----
    num_tiles = _cdiv(N, tn)
    ncores = _num_tensorcores()
    num_slices = ncores if (ncores > 1 and num_tiles >= ncores) else 1
    steps = _cdiv(num_tiles, num_slices)
    n_pad = num_slices * steps * tn

    if n_pad != N:
        y_pred = jnp.pad(y_pred, ((0, n_pad - N), (0, 0)))
        labels = jnp.pad(labels, ((0, n_pad - N), (0, 0)), constant_values=-1)

    def row_map(s, j):
        return (s * steps + j, 0)

    parts = pl.pallas_call(
        _ce_kernel,
        out_shape=jax.ShapeDtypeStruct((num_slices, 2, 128), jnp.float32),
        grid_spec=pltpu.PrefetchScalarGridSpec(
            num_scalar_prefetch=0,
            grid=(num_slices, steps),
            in_specs=[
                pl.BlockSpec((tn, 1), row_map),               # int32 labels
                pl.BlockSpec((tn, C), row_map),               # logits
                pl.BlockSpec((1, C), lambda s, j: (0, 0)),    # class weights (resident)
            ],
            out_specs=pl.BlockSpec((1, 2, 128), lambda s, j: (s, 0, 0)),
            scratch_shapes=[
                pltpu.VMEM((16, C), jnp.float32),             # [0:8] loss acc, [8:16] count acc
            ],
        ),
        compiler_params=pltpu.CompilerParams(
            dimension_semantics=("parallel", "arbitrary"),
            vmem_limit_bytes=vmem_limit,
        ),
    )(labels, y_pred, w2d)

    return jnp.sum(parts[:, 0, 0]) / jnp.sum(parts[:, 1, 0])


def _reference(y_true, y_pred, class_weights):
    """Pure-JAX reference mirroring nn.CrossEntropyLoss(weight=w) semantics."""
    labels = jnp.argmax(y_true, axis=1)
    logp = jax.nn.log_softmax(y_pred.astype(jnp.float32), axis=1)
    nll = -jnp.take_along_axis(logp, labels[:, None], axis=1)[:, 0]
    w = class_weights[labels]
    return jnp.sum(w * nll) / jnp.sum(w)


if __name__ == "__main__":
    key = jax.random.PRNGKey(0)
    k1, k2, k3, k4, k5, k6 = jax.random.split(key, 6)

    # Case 1: small square case (N=16, C=16), single tile / single slice.
    N, C = 16, 16
    class_weights = jax.random.uniform(k1, (C,), jnp.float32, 0.5, 2.0)
    labels = jax.random.randint(k2, (N,), 0, C)
    y_true = jax.nn.one_hot(labels, C, dtype=jnp.float32)
    y_pred = jax.random.normal(k3, (N, C), jnp.float32)

    loss = jax.block_until_ready(cross_entropy_loss(y_true, y_pred, class_weights))
    ref = _reference(y_true, y_pred, class_weights)
    assert jnp.allclose(loss, ref, rtol=1e-5, atol=1e-5), (loss, ref)

    # Case 2: ragged batch (N=300, C=10) with a small tile to exercise padding,
    # multi-step accumulation and (on v7x) the 2-slice dual-TC grid.
    N2, C2 = 300, 10
    cw2 = jax.random.uniform(k4, (C2,), jnp.float32, 0.5, 2.0)
    lab2 = jax.random.randint(k5, (N2,), 0, C2)
    yt2 = jax.nn.one_hot(lab2, C2, dtype=jnp.float32)
    yp2 = jax.random.normal(k6, (N2, C2), jnp.float32)

    loss2 = jax.block_until_ready(cross_entropy_loss(yt2, yp2, cw2, tile_n=64))
    ref2 = _reference(yt2, yp2, cw2)
    assert jnp.allclose(loss2, ref2, rtol=1e-5, atol=1e-5), (loss2, ref2)

    print("KERNEL_OK")
</pallas_src>

<mosaic_0001>
module attributes {stable_mosaic.version = 11 : i64} {
  func.func @_ce_kernel(%arg0: i32, %arg1: i32, %arg2: memref<16x1xi32, #tpu.memory_space<vmem>>, %arg3: memref<16x16xf32, #tpu.memory_space<vmem>>, %arg4: memref<1x16xf32, #tpu.memory_space<vmem>>, %arg5: memref<1x2x128xf32, #tpu.memory_space<vmem>>, %arg6: memref<16x16xf32, #tpu.memory_space<vmem>>) attributes {dimension_semantics = [#tpu.dimension_semantics<parallel>, #tpu.dimension_semantics<arbitrary>], iteration_bounds = array<i64: 1, 1>, scalar_prefetch = 0 : i64, scratch_operands = 1 : i64, tpu.core_type = #tpu.core_type<tc>, window_params = [{transform_indices = @transform_0, window_bounds = array<i64: 16, 1>}, {transform_indices = @transform_1, window_bounds = array<i64: 16, 16>}, {pipeline_mode = #tpu.pipeline_mode<synchronous>, transform_indices = @transform_2, window_bounds = array<i64: 1, 16>}, {transform_indices = @transform_3, window_bounds = array<i64: 1, 2, 128>}]} {
    %c0_i32 = arith.constant 0 : i32
    %0 = arith.cmpi eq, %arg1, %c0_i32 : i32
    %1 = arith.extui %0 : i1 to i32
    %c0_i32_0 = arith.constant 0 : i32
    %2 = arith.cmpi ne, %1, %c0_i32_0 : i32
    scf.if %2 {
      %cst_17 = arith.constant 0.000000e+00 : f32
      %36 = vector.broadcast %cst_17 : f32 to vector<16x16xf32>
      %c0_18 = arith.constant 0 : index
      %c0_19 = arith.constant 0 : index
      %37 = vector.load %arg6[%c0_18, %c0_19] : memref<16x16xf32, #tpu.memory_space<vmem>>, vector<16x16xf32>
      tpu.vector_store %arg6[%c0_18, %c0_19], %36 {strides = array<i32>} : memref<16x16xf32, #tpu.memory_space<vmem>>, vector<16x16xf32>,
    } else {
    }
    %c0 = arith.constant 0 : index
    %c0_1 = arith.constant 0 : index
    %3 = vector.load %arg3[%c0, %c0_1] : memref<16x16xf32, #tpu.memory_space<vmem>>, vector<16x16xf32>
    %c0_2 = arith.constant 0 : index
    %c0_3 = arith.constant 0 : index
    %4 = vector.load %arg2[%c0_2, %c0_3] : memref<16x1xi32, #tpu.memory_space<vmem>>, vector<16x1xi32>
    %5 = tpu.iota {dimensions = array<i32: 1>} : vector<16x16xi32>
    %6 = vector.broadcast %4 : vector<16x1xi32> to vector<16x16xi32>
    %7 = arith.cmpi eq, %5, %6 : vector<16x16xi32>
    %cst = arith.constant dense<0xFF800000> : vector<16xf32>
    %8 = vector.multi_reduction <maximumf>, %3, %cst [1] : vector<16x16xf32> to vector<16xf32>
    %9 = vector.shape_cast %8 : vector<16xf32> to vector<16x1xf32>
    %10 = vector.broadcast %9 : vector<16x1xf32> to vector<16x16xf32>
    %11 = arith.subf %3, %10 : vector<16x16xf32>
    %12 = math.exp %11 : vector<16x16xf32>
    %cst_4 = arith.constant dense<0.000000e+00> : vector<16xf32>
    %13 = vector.multi_reduction <add>, %12, %cst_4 [1] : vector<16x16xf32> to vector<16xf32>
    %14 = vector.shape_cast %13 : vector<16xf32> to vector<16x1xf32>
    %15 = math.log %14 : vector<16x1xf32>
    %16 = arith.addf %15, %9 : vector<16x1xf32>
    %17 = vector.broadcast %16 : vector<16x1xf32> to vector<16x16xf32>
    %18 = arith.subf %17, %3 : vector<16x16xf32>
    %cst_5 = arith.constant 0.000000e+00 : f32
    %19 = vector.broadcast %cst_5 : f32 to vector<16x16xf32>
    %20 = arith.select %7, %18, %19 : vector<16x16xi1>, vector<16x16xf32>
    %21 = arith.extui %7 : vector<16x16xi1> to vector<16x16xi32>
    %22 = arith.sitofp %21 : vector<16x16xi32> to vector<16x16xf32>
    %c0_6 = arith.constant 0 : index
    %c0_7 = arith.constant 0 : index
    %23 = vector.load %arg6[%c0_6, %c0_7] : memref<16x16xf32, #tpu.memory_space<vmem>>, vector<8x16xf32>
    %24 = vector.shape_cast %20 : vector<16x16xf32> to vector<2x8x16xf32>
    %cst_8 = arith.constant dense<0.000000e+00> : vector<8x16xf32>
    %25 = vector.multi_reduction <add>, %24, %cst_8 [0] : vector<2x8x16xf32> to vector<8x16xf32>
    %26 = arith.addf %23, %25 : vector<8x16xf32>
    %c0_9 = arith.constant 0 : index
    %c0_10 = arith.constant 0 : index
    %27 = vector.load %arg6[%c0_9, %c0_10] : memref<16x16xf32, #tpu.memory_space<vmem>>, vector<8x16xf32>
    tpu.vector_store %arg6[%c0_9, %c0_10], %26 {strides = array<i32>} : memref<16x16xf32, #tpu.memory_space<vmem>>, vector<8x16xf32>,
    %c8 = arith.constant 8 : index
    %c0_11 = arith.constant 0 : index
    %28 = vector.load %arg6[%c8, %c0_11] : memref<16x16xf32, #tpu.memory_space<vmem>>, vector<8x16xf32>
    %29 = vector.shape_cast %22 : vector<16x16xf32> to vector<2x8x16xf32>
    %cst_12 = arith.constant dense<0.000000e+00> : vector<8x16xf32>
    %30 = vector.multi_reduction <add>, %29, %cst_12 [0] : vector<2x8x16xf32> to vector<8x16xf32>
    %31 = arith.addf %28, %30 : vector<8x16xf32>
    %c8_13 = arith.constant 8 : index
    %c0_14 = arith.constant 0 : index
    %32 = vector.load %arg6[%c8_13, %c0_14] : memref<16x16xf32, #tpu.memory_space<vmem>>, vector<8x16xf32>
    tpu.vector_store %arg6[%c8_13, %c0_14], %31 {strides = array<i32>} : memref<16x16xf32, #tpu.memory_space<vmem>>, vector<8x16xf32>,
    %c0_i32_15 = arith.constant 0 : i32
    %33 = arith.cmpi eq, %arg1, %c0_i32_15 : i32
    %34 = arith.extui %33 : i1 to i32
    %c0_i32_16 = arith.constant 0 : i32
    %35 = arith.cmpi ne, %34, %c0_i32_16 : i32
    scf.if %35 {
      %c0_17 = arith.constant 0 : index
      %c0_18 = arith.constant 0 : index
      %36 = vector.load %arg4[%c0_17, %c0_18] : memref<1x16xf32, #tpu.memory_space<vmem>>, vector<1x16xf32>
      %c0_19 = arith.constant 0 : index
      %c0_20 = arith.constant 0 : index
      %37 = vector.load %arg6[%c0_19, %c0_20] : memref<16x16xf32, #tpu.memory_space<vmem>>, vector<8x16xf32>
      %38 = vector.broadcast %36 : vector<1x16xf32> to vector<8x16xf32>
      %39 = arith.mulf %38, %37 : vector<8x16xf32>
      %40 = vector.shape_cast %39 : vector<8x16xf32> to vector<1x8x16xf32>
      %cst_21 = arith.constant dense<0.000000e+00> : vector<1xf32>
      %41 = vector.multi_reduction <add>, %40, %cst_21 [1, 2] : vector<1x8x16xf32> to vector<1xf32>
      %42 = vector.shape_cast %41 : vector<1xf32> to vector<1x1x1xf32>
      %43 = vector.extract %42[0, 0, 0] : f32 from vector<1x1x1xf32>
      %c8_22 = arith.constant 8 : index
      %c0_23 = arith.constant 0 : index
      %44 = vector.load %arg6[%c8_22, %c0_23] : memref<16x16xf32, #tpu.memory_space<vmem>>, vector<8x16xf32>
      %45 = vector.broadcast %36 : vector<1x16xf32> to vector<8x16xf32>
      %46 = arith.mulf %45, %44 : vector<8x16xf32>
      %47 = vector.shape_cast %46 : vector<8x16xf32> to vector<1x8x16xf32>
      %cst_24 = arith.constant dense<0.000000e+00> : vector<1xf32>
      %48 = vector.multi_reduction <add>, %47, %cst_24 [1, 2] : vector<1x8x16xf32> to vector<1xf32>
      %49 = vector.shape_cast %48 : vector<1xf32> to vector<1x1x1xf32>
      %50 = vector.extract %49[0, 0, 0] : f32 from vector<1x1x1xf32>
      %51 = tpu.iota {dimensions = array<i32: 1>} : vector<1x2x128xi32>
      %c0_i32_25 = arith.constant 0 : i32
      %52 = vector.broadcast %c0_i32_25 : i32 to vector<1x2x128xi32>
      %53 = arith.cmpi eq, %51, %52 : vector<1x2x128xi32>
      %54 = vector.broadcast %43 : f32 to vector<1x2x128xf32>
      %55 = vector.broadcast %50 : f32 to vector<1x2x128xf32>
      %56 = arith.select %53, %54, %55 : vector<1x2x128xi1>, vector<1x2x128xf32>
      %c0_26 = arith.constant 0 : index
      %c0_27 = arith.constant 0 : index
      %c0_28 = arith.constant 0 : index
      %57 = vector.load %arg5[%c0_26, %c0_27, %c0_28] : memref<1x2x128xf32, #tpu.memory_space<vmem>>, vector<1x2x128xf32>
      tpu.vector_store %arg5[%c0_26, %c0_27, %c0_28], %56 {strides = array<i32>} : memref<1x2x128xf32, #tpu.memory_space<vmem>>, vector<1x2x128xf32>,
    } else {
    }
    return
  }
  func.func @transform_0(%arg0: i32, %arg1: i32) -> (i32, i32) {
    %c1_i32 = arith.constant 1 : i32
    %0 = arith.muli %arg0, %c1_i32 : i32
    %1 = arith.addi %0, %arg1 : i32
    %c0_i32 = arith.constant 0 : i32
    %c0_i32_0 = arith.constant 0 : i32
    return %1, %c0_i32 : i32, i32
  }
  func.func @transform_1(%arg0: i32, %arg1: i32) -> (i32, i32) {
    %c1_i32 = arith.constant 1 : i32
    %0 = arith.muli %arg0, %c1_i32 : i32
    %1 = arith.addi %0, %arg1 : i32
    %c0_i32 = arith.constant 0 : i32
    %c0_i32_0 = arith.constant 0 : i32
    return %1, %c0_i32 : i32, i32
  }
  func.func @transform_2(%arg0: i32, %arg1: i32) -> (i32, i32) {
    %c0_i32 = arith.constant 0 : i32
    %c0_i32_0 = arith.constant 0 : i32
    %c0_i32_1 = arith.constant 0 : i32
    return %c0_i32, %c0_i32_0 : i32, i32
  }
  func.func @transform_3(%arg0: i32, %arg1: i32) -> (i32, i32, i32) {
    %c0_i32 = arith.constant 0 : i32
    %c0_i32_0 = arith.constant 0 : i32
    %c0_i32_1 = arith.constant 0 : i32
    return %arg0, %c0_i32, %c0_i32_0 : i32, i32, i32
  }
}

</mosaic_0001>

<llo_original>
// kernel: tpu_custom_call.1
$region0: #{tpu_custom_call.1}
  #allocation0 [shape = 'u32[]', space=smem, size = 0x4, offset = 0x4, fixed_abs, tag = 'smem constant byte address 0x4 - core index']
  #allocation1 [shape = 'u32[144,128]{1,0:T(1,128)}', space=vmem, size = 0x12000, scoped, tag = 'internal scratch']
  #allocation2 [shape = 'f32[16,16]{1,0:T(8,128)}', space=vmem, size = 0x2000, scoped, tag = 'scratch operand']
  %s0 = inlined_call_operand.vmem [shape: s32[16,1], index: 0, kind: input, shape index: {}]
  %s1 = inlined_call_operand.vmem [shape: f32[16,16], index: 1, kind: input, shape index: {}]
  %s2 = inlined_call_operand.vmem [shape: f32[1,16], index: 2, kind: input, shape index: {}]
  %s3 = inlined_call_operand.hbm [shape: f32[1,2,128], index: 3, kind: output, shape index: {}]
  %s4 = sld [smem:[#allocation0]]
  $region30: #{tpu_custom_call.1} parent=0
    _
  %s6 = ssub.s32 1, %s4
  %s7 = scalar_select 0, %s6, %s4
  $region1: #{tpu_custom_call.1} parent=0
    #allocation3 [shape = 'u8[1024]{0}', space=vmem, size = 0x400, scoped, tag = 'output window, operand 0, single buffered']
    #allocation4 [shape = 's32[1]{0}', space=sflag, size = 0x4, scoped, tag = 'scoped memory for tpu_custom_call.1']
    %8 = vsyncpa [#allocation4], 0
    // Predicated region
    $region2: #{tpu_custom_call.1} parent=1 // pred_check
      _
    $region3: #{tpu_custom_call.1} parent=1 // pred_check_branch
      %10 = sbr.rel (0) target = $region5
    $region4: #{tpu_custom_call.1} parent=1 // pred_region
      %s11 = sadd.s32 0, 0
      %s12 = smul.u32 2, %s11
      %p13 = scmp.lt.s32.totalorder %s12, 1
      %s14 = scalar_select %p13, %s12, 1
      %s15 = smul.addr %s14, 8
      %s16 = scalar_lea.vmem %s0, %s15
      %s17 = sadd.s32 0, 0
      %s18 = smul.u32 2, %s17
    $region5: #{tpu_custom_call.1} parent=1 // pred_fallthru
      _
    // Predicated region
    $region6: #{tpu_custom_call.1} parent=1 // pred_check
      _
    $region7: #{tpu_custom_call.1} parent=1 // pred_check_branch
      %20 = sbr.rel (0) target = $region9
    $region8: #{tpu_custom_call.1} parent=1 // pred_region
      %s21 = sadd.s32 0, 0
      %s22 = smul.u32 2, %s21
      %p23 = scmp.lt.s32.totalorder %s22, 1
      %s24 = scalar_select %p23, %s22, 1
      %s25 = smul.addr %s24, 8
      %s26 = scalar_lea.vmem %s1, %s25
      %s27 = sadd.s32 0, 0
      %s28 = smul.u32 2, %s27
    $region9: #{tpu_custom_call.1} parent=1 // pred_fallthru
      _
    // Predicated region
    $region10: #{tpu_custom_call.1} parent=1 // pred_check
      _
    $region11: #{tpu_custom_call.1} parent=1 // pred_check_branch
      %30 = sbr.rel (0) target = $region13
    $region12: #{tpu_custom_call.1} parent=1 // pred_region
      _
    $region13: #{tpu_custom_call.1} parent=1 // pred_fallthru
      _
    %s31 = sadd.s32 0, 0
    %s32 = smul.u32 2, %s31
    %p33 = scmp.lt.s32.totalorder %s32, 1
    %s34 = scalar_select %p33, %s32, 1
    %s35 = smul.addr %s34, 8
    %s36 = scalar_lea.vmem %s0, %s35
    %s37 = sadd.s32 0, 0
    %s38 = smul.u32 2, %s37
    %p39 = scmp.lt.s32.totalorder %s38, 1
    %s40 = scalar_select %p39, %s38, 1
    %s41 = smul.addr %s40, 8
    %s42 = scalar_lea.vmem %s1, %s41
    %s43 = sadd.s32 0, 0
    %s44 = smul.u32 2, %s43
    %p45 = scmp.lt.s32.totalorder %s44, 1
    %s46 = scalar_select %p45, %s44, 1
    %s47 = smul.addr %s46, 8
    %s48 = scalar_lea.vmem %s0, %s47
    %s49 = sadd.s32 0, 0
    %s50 = smul.u32 2, %s49
    %s51 = sadd.s32 0, 0
    %s52 = smul.u32 2, %s51
    %p53 = scmp.lt.s32.totalorder %s52, 1
    %s54 = scalar_select %p53, %s52, 1
    %s55 = smul.addr %s54, 8
    %s56 = scalar_lea.vmem %s1, %s55
    %s57 = sadd.s32 0, 0
    %s58 = smul.u32 2, %s57
    %p59 = scmp.eq.s32.totalorder 0, 0
    // Predicated region
    $region14: #{tpu_custom_call.1} parent=1 // pred_check
      %p60 = pneg %p59
    $region15: #{tpu_custom_call.1} parent=1 // pred_check_branch
      %62 = sbr.rel (%p60) target = $region17
    $region16: #{tpu_custom_call.1} parent=1 // pred_region
      %vm63 = vcmask 130048
      %64 = vst.msk [vmem:[#allocation2] sm:$0xff] %vm63, 0.0
      %65 = vst.msk [vmem:[#allocation2 + $0x8] sm:$0xff] %vm63, 0.0
    $region17: #{tpu_custom_call.1} parent=1 // pred_fallthru
      _
    %v66 = vld [vmem:[%s56] sm:$0xff]
    %v67 = vld [vmem:[%s56 + $0x8] sm:$0xff]
    %v68 = vld [vmem:[%s48] sm:$0xff]
    %v69 = vld [vmem:[%s48 + $0x8] sm:$0xff]
    %v70 = vlaneseq
    %v71 = vand.u32 %v70, 127
    %72 = vset.pattern.permute.xlu0 0
    %73 = vperm.xlu0 %72, %v68
    %v74 = vpop.permute.xlu0 %73
    %75 = vset.pattern.permute.xlu0 0
    %76 = vperm.xlu0 %75, %v69
    %v77 = vpop.permute.xlu0 %76
    %vm78 = vcmp.eq.s32.totalorder %v71, %v74
    %vm79 = vcmp.eq.s32.totalorder %v71, %v77
    %vm80 = vcmask 130048
    %v81 = vsel %vm80, %v66, -inf
    %82 = vmax.xlane.f32.xlu0 %v81
    %v83 = vpop.xlane.xlu0 %82
    %v84 = vsel %vm80, %v67, -inf
    %85 = vmax.xlane.f32.xlu0 %v84
    %v86 = vpop.xlane.xlu0 %85
    %v87 = vsub.f32 %v66, %v83
    %v88 = vsub.f32 %v67, %v86
    %v89 = vmul.f32 %v87, 1.442695
    %v90 = vpow.pop %v89
    %v91 = vmul.f32 %v88, 1.442695
    %v92 = vpow.pop %v91
    %v93 = vsel %vm80, %v90, 0.0
    %94 = vadd.xlane.f32.xlu0 %v93
    %v95 = vpop.xlane.xlu0 %94
    %v96 = vsel %vm80, %v92, 0.0
    %97 = vadd.xlane.f32.xlu0 %v96
    %v98 = vpop.xlane.xlu0 %97
    %v99 = vlog2.pop %v95
    %v100 = vmul.f32 %v99, 0.6931472
    %v101 = vlog2.pop %v98
    %v102 = vmul.f32 %v101, 0.6931472
    %v103 = vadd.f32 %v100, %v83
    %v104 = vadd.f32 %v102, %v86
    %v105 = vsub.f32 %v103, %v66
    %v106 = vsub.f32 %v104, %v67
    %v107 = vsel %vm78, %v105, 0.0
    %v108 = vsel %vm79, %v106, 0.0
    %v109 = vsel %vm78, 1, 0
    %v110 = vsel %vm79, 1, 0
    %v111 = vcvt.s32.f32 %v109
    %v112 = vcvt.s32.f32 %v110
    %v113 = vld [vmem:[#allocation2] sm:$0xff]
    %v114 = vsel %vm80, %v107, 0.0
    %v115 = vsel %vm80, %v108, 0.0
    %v116 = vadd.f32 %v114, %v115
    %v117 = vadd.f32 %v113, %v116
    %118 = vst.msk [vmem:[#allocation2] sm:$0xff] %vm80, %v117
    %v119 = vld [vmem:[#allocation2 + $0x8] sm:$0xff]
    %v120 = vsel %vm80, %v111, 0.0
    %v121 = vsel %vm80, %v112, 0.0
    %v122 = vadd.f32 %v120, %v121
    %v123 = vadd.f32 %v119, %v122
    %124 = vst.msk [vmem:[#allocation2 + $0x8] sm:$0xff] %vm80, %v123
    // Predicated region
    $region18: #{tpu_custom_call.1} parent=1 // pred_check
      %p125 = pneg %p59
    $region19: #{tpu_custom_call.1} parent=1 // pred_check_branch
      %127 = sbr.rel (%p125) target = $region21
    $region20: #{tpu_custom_call.1} parent=1 // pred_region
      %v128 = vld [vmem:[%s2] sm:$0x1]
      %v129 = vld [vmem:[#allocation2] sm:$0xff]
      %v131 = vlaneseq
      %v132 = vshrl.u32 %v131, 7
      %v133 = vsub.s32 0, %v132
      %v134 = vrot.slane %v128, %v133
      %v136 = vmul.f32 %v134, %v129
      %v137 = vsel %vm80, %v136, 0.0
      %138 = vadd.xlane.f32.xlu0 %v137
      %v139 = vpop.xlane.xlu0 %138
      %v140 = vrot.slane %v139, 4
      %v141 = vadd.f32 %v139, %v140
      %v142 = vrot.slane %v141, 2
      %v143 = vadd.f32 %v141, %v142
      %v144 = vrot.slane %v143, 1
      %v145 = vadd.f32 %v143, %v144
      %s146 = vtos %v145
      %v147 = vld [vmem:[#allocation2 + $0x8] sm:$0xff]
      %v148 = vmul.f32 %v134, %v147
      %v149 = vsel %vm80, %v148, 0.0
      %150 = vadd.xlane.f32.xlu0 %v149
      %v151 = vpop.xlane.xlu0 %150
      %v152 = vrot.slane %v151, 4
      %v153 = vadd.f32 %v151, %v152
      %v154 = vrot.slane %v153, 2
      %v155 = vadd.f32 %v153, %v154
      %v156 = vrot.slane %v155, 1
      %v157 = vadd.f32 %v155, %v156
      %s158 = vtos %v157
      %v159 = vlaneseq
      %v160 = vshrl.u32 %v159, 7
      %vm161 = vcmp.eq.s32.totalorder %v160, 0
      %v162 = vstv %s146
      %v163 = vstv %s158
      %v164 = vsel %vm161, %v162, %v163
      %165 = vst [vmem:[#allocation3] sm:$0x3] %v164
    $region21: #{tpu_custom_call.1} parent=1 // pred_fallthru
      _
    // Predicated region
    $region22: #{tpu_custom_call.1} parent=1 // pred_check
      _
    $region23: #{tpu_custom_call.1} parent=1 // pred_check_branch
      %167 = sbr.rel (0) target = $region25
    $region24: #{tpu_custom_call.1} parent=1 // pred_region
      %s169 = ssub.s32 32, 32
      %170 = vsyncadd [#allocation4], %s169
      %s172 = sshll.u32 [#allocation3], 4
      %s173 = int_to_ptr.vmem [resolvable:$true] %s172
      %175 = dma.vmem_to_hbm [thread:$0]  %s173, 32, %s3, [#allocation4]
    $region25: #{tpu_custom_call.1} parent=1 // pred_fallthru
      _
    // Predicated region
    $region26: #{tpu_custom_call.1} parent=1 // pred_check
      _
    $region27: #{tpu_custom_call.1} parent=1 // pred_check_branch
      %177 = sbr.rel (0) target = $region29
    $region28: #{tpu_custom_call.1} parent=1 // pred_region
      %178 = dma.done [#allocation4], 32
    $region29: #{tpu_custom_call.1} parent=1 // pred_fallthru
      _
    %179 = vsyncpa [#allocation4], 1

</llo_original>
